<compile_context>
chip_gen: v7x
topology: tpu7x:2x2x1
jax: 0.10.0
libtpu: 0.0.40
codegen_flags: <defaults>
</compile_context>

<pallas_src>
import functools

import jax
import jax.numpy as jnp
import numpy as np
from jax import lax
from jax.experimental import pallas as pl
from jax.experimental.pallas import tpu as pltpu


def _round_up(x, m):
    return ((x + m - 1) // m) * m


def _stable_softplus(x):
    # torch log(1 + exp(rho)) with an overflow-safe threshold.
    return jnp.where(x > 20.0, x, jnp.log1p(jnp.exp(jnp.minimum(x, 20.0))))


def _vmem_capacity_bytes():
    """Physical VMEM per core (128 MiB v5e/v6e, 64 MiB v7x), best effort."""
    try:
        return int(pltpu.get_tpu_info().vmem_capacity_bytes)
    except Exception:
        pass
    kind = ""
    try:
        kind = jax.devices()[0].device_kind.lower()
    except Exception:
        pass
    if "v5" in kind or "v6" in kind:
        return 128 * 1024 * 1024
    # Conservative default (covers v7x's 64 MiB and unknown parts).
    return 64 * 1024 * 1024


def _footprint_bytes(tm, tn, tk):
    # f32 VMEM tiles, double-buffered inputs + revisited output block.
    return 4 * (2 * tm * tk + 2 * 3 * tn * tk + 2 * tn + 2 * tm * tn)


def _select_tiles(batch, out_features, in_features, budget, tm, tn, tk):
    bp8 = _round_up(batch, 8)
    np128 = _round_up(out_features, 128)
    kp128 = _round_up(in_features, 128)

    # Defaults: tm grows toward the full (padded) batch so the weight stream
    # (mu, rho, eps_w) is read and re-softplus'd as few times as possible.
    tm = min(bp8, 1024) if tm is None else min(_round_up(tm, 8), bp8)
    tn = min(np128, 512) if tn is None else min(_round_up(tn, 128), np128)
    tk = min(kp128, 1024) if tk is None else min(_round_up(tk, 128), kp128)

    # Shrink until the double-buffered footprint fits the VMEM budget.
    while _footprint_bytes(tm, tn, tk) > budget:
        if tk >= tn and tk > 128:
            tk = max(128, (tk // 2) // 128 * 128)
        elif tn > 128:
            tn = max(128, (tn // 2) // 128 * 128)
        elif tk > 128:
            tk = max(128, (tk // 2) // 128 * 128)
        elif tm > 8:
            tm = max(8, _round_up(tm // 2, 8))
        else:
            break

    # v7x megacore: make sure there are >= 2 blocks on the "parallel" axes
    # whenever the output width allows (harmless on single-core parts).
    while True:
        bp = _round_up(batch, tm)
        np_pad = _round_up(out_features, tn)
        if (bp // tm) * (np_pad // tn) >= 2 or tn <= 128:
            break
        tn = max(128, (tn // 2) // 128 * 128)

    return tm, tn, tk


def _maybe_pad2(a, rows, cols):
    if a.shape == (rows, cols):
        return a
    return jnp.pad(a, ((0, rows - a.shape[0]), (0, cols - a.shape[1])))


def _maybe_pad1(a, n):
    if a.shape[0] == n:
        return a
    return jnp.pad(a, (0, n - a.shape[0]))


def _bnn_linear_kernel(matmul_dtype, x_ref, wmu_ref, wrho_ref, epsw_ref,
                       bias_ref, o_ref):
    k = pl.program_id(2)

    @pl.when(k == 0)
    def _():
        o_ref[...] = jnp.zeros_like(o_ref)

    # Reparameterized weight tile (tn, tk) in f32 (VPU + EUP softplus).
    w = wmu_ref[...] + _stable_softplus(wrho_ref[...]) * epsw_ref[...]

    # y += x @ w.T as a last-dim contraction (tm,tk) x (tn,tk) -> (tm,tn).
    # Operands cast to bf16 for the bf16-native MXU; accumulation stays f32
    # directly in the VMEM-resident output block (block index constant over k).
    o_ref[...] += lax.dot_general(
        x_ref[...].astype(matmul_dtype), w.astype(matmul_dtype),
        dimension_numbers=(((1,), (1,)), ((), ())),
        preferred_element_type=jnp.float32)

    # Epilogue: add the (wrapper-precomputed) reparameterized bias row once.
    @pl.when(k == pl.num_programs(2) - 1)
    def _():
        o_ref[...] += bias_ref[...]


def bnn_linear_forward(x, weight_mu, weight_rho, eps_w,
                       bias_mu, bias_rho, eps_b,
                       *, tm=None, tn=None, tk=None,
                       matmul_dtype=jnp.bfloat16):
    """x: (B, in); weight_*, eps_w: (out, in); bias_*, eps_b: (out,) -> (B, out)."""
    batch, in_features = x.shape
    out_features = weight_mu.shape[0]

    vmem_cap = _vmem_capacity_bytes()
    vmem_limit = min(vmem_cap * 3 // 4, 100 * 1024 * 1024)
    budget = int(vmem_limit * 0.7)

    tm, tn, tk = _select_tiles(batch, out_features, in_features, budget, tm, tn, tk)

    bp = _round_up(batch, tm)
    np_pad = _round_up(out_features, tn)
    kp = _round_up(in_features, tk)

    # Bias reparameterization is O(out): do it once in the wrapper and ship a
    # single lane-dense row (drops 3 kernel inputs and their BlockSpecs).
    bias = bias_mu + _stable_softplus(bias_rho) * eps_b

    # Zero padding is safe: padded eps/mu rows are 0 => padded weight rows are
    # 0; padded K columns of x are 0; padded out columns are sliced away.
    x_p = _maybe_pad2(x, bp, kp)
    wmu_p = _maybe_pad2(weight_mu, np_pad, kp)
    wrho_p = _maybe_pad2(weight_rho, np_pad, kp)
    epsw_p = _maybe_pad2(eps_w, np_pad, kp)
    bias_p = _maybe_pad1(bias, np_pad).reshape(1, np_pad)

    grid = (bp // tm, np_pad // tn, kp // tk)
    kernel = functools.partial(_bnn_linear_kernel, matmul_dtype)

    out = pl.pallas_call(
        kernel,
        out_shape=jax.ShapeDtypeStruct((bp, np_pad), jnp.float32),
        grid_spec=pltpu.PrefetchScalarGridSpec(
            num_scalar_prefetch=0,
            grid=grid,
            in_specs=[
                pl.BlockSpec((tm, tk), lambda i, j, k: (i, k)),   # x
                pl.BlockSpec((tn, tk), lambda i, j, k: (j, k)),   # weight_mu
                pl.BlockSpec((tn, tk), lambda i, j, k: (j, k)),   # weight_rho
                pl.BlockSpec((tn, tk), lambda i, j, k: (j, k)),   # eps_w
                pl.BlockSpec((1, tn), lambda i, j, k: (0, j)),    # bias row
            ],
            out_specs=pl.BlockSpec((tm, tn), lambda i, j, k: (i, j)),
        ),
        compiler_params=pltpu.CompilerParams(
            dimension_semantics=("parallel", "parallel", "arbitrary"),
            vmem_limit_bytes=int(vmem_limit),
        ),
    )(x_p, wmu_p, wrho_p, epsw_p, bias_p)

    return out[:batch, :out_features]


def init_params(key, in_features, out_features):
    """Deterministic init matching the torch module's __init__."""
    # kaiming_uniform_(a=sqrt(5)) -> bound = 1/sqrt(fan_in)
    bound = 1.0 / np.sqrt(in_features)
    weight_mu = jax.random.uniform(
        key, (out_features, in_features), jnp.float32, minval=-bound, maxval=bound)
    weight_rho = jnp.full((out_features, in_features), -5.0, jnp.float32)
    bias_mu = jnp.zeros((out_features,), jnp.float32)
    bias_rho = jnp.full((out_features,), -5.0, jnp.float32)
    return weight_mu, weight_rho, bias_mu, bias_rho


def _reference(x, wmu, wrho, epsw, bmu, brho, epsb):
    """float64 numpy reference (avoids TPU default-precision ambiguity)."""
    def sp(v):
        return np.where(v > 20.0, v, np.log1p(np.exp(np.minimum(v, 20.0))))
    x, wmu, wrho, epsw, bmu, brho, epsb = (
        np.asarray(a, np.float64) for a in (x, wmu, wrho, epsw, bmu, brho, epsb))
    w = wmu + sp(wrho) * epsw
    b = bmu + sp(brho) * epsb
    return x @ w.T + b


if __name__ == "__main__":
    # Case 1: module-like small shapes, exact f32 matmul path (single tile,
    # out padded to 128 lanes).
    in_features, out_features, batch = 32, 16, 8
    key = jax.random.PRNGKey(0)
    k_x, k_w, k_eps_w, k_eps_b = jax.random.split(key, 4)

    x = jax.random.normal(k_x, (batch, in_features), jnp.float32)
    weight_mu, weight_rho, bias_mu, bias_rho = init_params(
        k_w, in_features, out_features)
    eps_w = jax.random.normal(k_eps_w, (out_features, in_features), jnp.float32)
    eps_b = jax.random.normal(k_eps_b, (out_features,), jnp.float32)

    y = jax.block_until_ready(bnn_linear_forward(
        x, weight_mu, weight_rho, eps_w, bias_mu, bias_rho, eps_b,
        matmul_dtype=jnp.float32))
    y_ref = _reference(x, weight_mu, weight_rho, eps_w, bias_mu, bias_rho, eps_b)
    np.testing.assert_allclose(np.asarray(y), y_ref, rtol=1e-4, atol=1e-4)

    # Case 2: multi-tile shapes with small tile overrides to exercise the
    # (i, j, k) grid, the in-place K accumulation, and the bias epilogue,
    # using the default bf16 MXU path (looser tolerance).
    in2, out2, batch2 = 256, 256, 16
    k2 = jax.random.split(jax.random.PRNGKey(1), 4)
    x2 = jax.random.normal(k2[0], (batch2, in2), jnp.float32)
    wmu2, wrho2, bmu2, brho2 = init_params(k2[1], in2, out2)
    epsw2 = jax.random.normal(k2[2], (out2, in2), jnp.float32)
    epsb2 = jax.random.normal(k2[3], (out2,), jnp.float32)

    y2 = jax.block_until_ready(bnn_linear_forward(
        x2, wmu2, wrho2, epsw2, bmu2, brho2, epsb2, tm=8, tn=128, tk=128))
    y2_ref = _reference(x2, wmu2, wrho2, epsw2, bmu2, brho2, epsb2)
    np.testing.assert_allclose(np.asarray(y2), y2_ref, rtol=2e-2, atol=2e-2)

    # Case 3: auto-selected tiles + bf16 path on the small shape (default API).
    y3 = jax.block_until_ready(bnn_linear_forward(
        x, weight_mu, weight_rho, eps_w, bias_mu, bias_rho, eps_b))
    np.testing.assert_allclose(np.asarray(y3), y_ref, rtol=2e-2, atol=2e-2)

    print("KERNEL_OK")
</pallas_src>

<mosaic_0001>
module attributes {stable_mosaic.version = 11 : i64} {
  func.func @_bnn_linear_kernel(%arg0: i32, %arg1: i32, %arg2: i32, %arg3: memref<8x128xf32, #tpu.memory_space<vmem>>, %arg4: memref<128x128xf32, #tpu.memory_space<vmem>>, %arg5: memref<128x128xf32, #tpu.memory_space<vmem>>, %arg6: memref<128x128xf32, #tpu.memory_space<vmem>>, %arg7: memref<1x128xf32, #tpu.memory_space<vmem>>, %arg8: memref<8x128xf32, #tpu.memory_space<vmem>>) attributes {dimension_semantics = [#tpu.dimension_semantics<parallel>, #tpu.dimension_semantics<parallel>, #tpu.dimension_semantics<arbitrary>], iteration_bounds = array<i64: 1, 1, 1>, scalar_prefetch = 0 : i64, scratch_operands = 0 : i64, tpu.core_type = #tpu.core_type<tc>, window_params = [{transform_indices = @transform_0, window_bounds = array<i64: 8, 128>}, {transform_indices = @transform_1, window_bounds = array<i64: 128, 128>}, {transform_indices = @transform_2, window_bounds = array<i64: 128, 128>}, {transform_indices = @transform_3, window_bounds = array<i64: 128, 128>}, {transform_indices = @transform_4, window_bounds = array<i64: 1, 128>}, {transform_indices = @transform_5, window_bounds = array<i64: 8, 128>}]} {
    %c0_i32 = arith.constant 0 : i32
    %0 = arith.cmpi eq, %arg2, %c0_i32 : i32
    %1 = arith.extui %0 : i1 to i32
    %c0_i32_0 = arith.constant 0 : i32
    %2 = arith.cmpi ne, %1, %c0_i32_0 : i32
    scf.if %2 {
      %cst_16 = arith.constant 0.000000e+00 : f32
      %23 = vector.broadcast %cst_16 : f32 to vector<8x128xf32>
      %c0_17 = arith.constant 0 : index
      %c0_18 = arith.constant 0 : index
      %24 = vector.load %arg8[%c0_17, %c0_18] : memref<8x128xf32, #tpu.memory_space<vmem>>, vector<8x128xf32>
      tpu.vector_store %arg8[%c0_17, %c0_18], %23 {strides = array<i32>} : memref<8x128xf32, #tpu.memory_space<vmem>>, vector<8x128xf32>,
    } else {
    }
    %c0 = arith.constant 0 : index
    %c0_1 = arith.constant 0 : index
    %3 = vector.load %arg4[%c0, %c0_1] : memref<128x128xf32, #tpu.memory_space<vmem>>, vector<128x128xf32>
    %c0_2 = arith.constant 0 : index
    %c0_3 = arith.constant 0 : index
    %4 = vector.load %arg5[%c0_2, %c0_3] : memref<128x128xf32, #tpu.memory_space<vmem>>, vector<128x128xf32>
    %cst = arith.constant 2.000000e+01 : f32
    %5 = vector.broadcast %cst : f32 to vector<128x128xf32>
    %6 = arith.cmpf ogt, %4, %5 : vector<128x128xf32>
    %cst_4 = arith.constant 2.000000e+01 : f32
    %7 = vector.broadcast %cst_4 : f32 to vector<128x128xf32>
    %8 = arith.minimumf %4, %7 : vector<128x128xf32>
    %9 = math.exp %8 : vector<128x128xf32>
    %10 = math.log1p %9 : vector<128x128xf32>
    %11 = arith.select %6, %4, %10 : vector<128x128xi1>, vector<128x128xf32>
    %c0_5 = arith.constant 0 : index
    %c0_6 = arith.constant 0 : index
    %12 = vector.load %arg6[%c0_5, %c0_6] : memref<128x128xf32, #tpu.memory_space<vmem>>, vector<128x128xf32>
    %13 = arith.mulf %11, %12 : vector<128x128xf32>
    %14 = arith.addf %3, %13 : vector<128x128xf32>
    %c0_7 = arith.constant 0 : index
    %c0_8 = arith.constant 0 : index
    %15 = vector.load %arg8[%c0_7, %c0_8] : memref<8x128xf32, #tpu.memory_space<vmem>>, vector<8x128xf32>
    %c0_9 = arith.constant 0 : index
    %c0_10 = arith.constant 0 : index
    %16 = vector.load %arg3[%c0_9, %c0_10] : memref<8x128xf32, #tpu.memory_space<vmem>>, vector<8x128xf32>
    %cst_11 = arith.constant dense<0.000000e+00> : vector<8x128xf32>
    %17 = tpu.matmul %16, %14, %cst_11 {dimension_numbers = #tpu.dot_dimension_numbers<[1], [1], [0], [0], [0, 0, 1, 0], [], []>} : vector<8x128xf32>, vector<128x128xf32>, vector<8x128xf32> -> vector<8x128xf32>
    %18 = arith.addf %15, %17 : vector<8x128xf32>
    %c0_12 = arith.constant 0 : index
    %c0_13 = arith.constant 0 : index
    %19 = vector.load %arg8[%c0_12, %c0_13] : memref<8x128xf32, #tpu.memory_space<vmem>>, vector<8x128xf32>
    tpu.vector_store %arg8[%c0_12, %c0_13], %18 {strides = array<i32>} : memref<8x128xf32, #tpu.memory_space<vmem>>, vector<8x128xf32>,
    %c0_i32_14 = arith.constant 0 : i32
    %20 = arith.cmpi eq, %arg2, %c0_i32_14 : i32
    %21 = arith.extui %20 : i1 to i32
    %c0_i32_15 = arith.constant 0 : i32
    %22 = arith.cmpi ne, %21, %c0_i32_15 : i32
    scf.if %22 {
      %c0_16 = arith.constant 0 : index
      %c0_17 = arith.constant 0 : index
      %23 = vector.load %arg8[%c0_16, %c0_17] : memref<8x128xf32, #tpu.memory_space<vmem>>, vector<8x128xf32>
      %c0_18 = arith.constant 0 : index
      %c0_19 = arith.constant 0 : index
      %24 = vector.load %arg7[%c0_18, %c0_19] : memref<1x128xf32, #tpu.memory_space<vmem>>, vector<1x128xf32>
      %25 = vector.broadcast %24 : vector<1x128xf32> to vector<8x128xf32>
      %26 = arith.addf %23, %25 : vector<8x128xf32>
      %c0_20 = arith.constant 0 : index
      %c0_21 = arith.constant 0 : index
      %27 = vector.load %arg8[%c0_20, %c0_21] : memref<8x128xf32, #tpu.memory_space<vmem>>, vector<8x128xf32>
      tpu.vector_store %arg8[%c0_20, %c0_21], %26 {strides = array<i32>} : memref<8x128xf32, #tpu.memory_space<vmem>>, vector<8x128xf32>,
    } else {
    }
    return
  }
  func.func @transform_0(%arg0: i32, %arg1: i32, %arg2: i32) -> (i32, i32) {
    %c0_i32 = arith.constant 0 : i32
    return %arg0, %arg2 : i32, i32
  }
  func.func @transform_1(%arg0: i32, %arg1: i32, %arg2: i32) -> (i32, i32) {
    %c0_i32 = arith.constant 0 : i32
    return %arg1, %arg2 : i32, i32
  }
  func.func @transform_2(%arg0: i32, %arg1: i32, %arg2: i32) -> (i32, i32) {
    %c0_i32 = arith.constant 0 : i32
    return %arg1, %arg2 : i32, i32
  }
  func.func @transform_3(%arg0: i32, %arg1: i32, %arg2: i32) -> (i32, i32) {
    %c0_i32 = arith.constant 0 : i32
    return %arg1, %arg2 : i32, i32
  }
  func.func @transform_4(%arg0: i32, %arg1: i32, %arg2: i32) -> (i32, i32) {
    %c0_i32 = arith.constant 0 : i32
    %c0_i32_0 = arith.constant 0 : i32
    return %c0_i32, %arg1 : i32, i32
  }
  func.func @transform_5(%arg0: i32, %arg1: i32, %arg2: i32) -> (i32, i32) {
    %c0_i32 = arith.constant 0 : i32
    return %arg0, %arg1 : i32, i32
  }
}

</mosaic_0001>

<llo_original>
// kernel: tpu_custom_call.1
$region0: #{tpu_custom_call.1}
  #allocation0 [shape = 'u32[]', space=smem, size = 0x4, offset = 0x4, fixed_abs, tag = 'smem constant byte address 0x4 - core index']
  #allocation1 [shape = 'u32[144,128]{1,0:T(1,128)}', space=vmem, size = 0x12000, scoped, tag = 'internal scratch']
  %s0 = inlined_call_operand.hbm [shape: f32[8,128], index: 0, kind: input, shape index: {}]
  %s1 = inlined_call_operand.hbm [shape: f32[128,128], index: 1, kind: input, shape index: {}]
  %s2 = inlined_call_operand.hbm [shape: f32[128,128], index: 2, kind: input, shape index: {}]
  %s3 = inlined_call_operand.hbm [shape: f32[128,128], index: 3, kind: input, shape index: {}]
  %s4 = inlined_call_operand.vmem [shape: f32[1,128], index: 4, kind: input, shape index: {}]
  %s5 = inlined_call_operand.hbm [shape: f32[8,128], index: 5, kind: output, shape index: {}]
  %s6 = sld [smem:[#allocation0]]
  $region54: #{tpu_custom_call.1} parent=0
    _
  %s8 = ssub.s32 1, %s6
  %s9 = scalar_select 0, %s8, %s6
  $region1: #{tpu_custom_call.1} parent=0
    #allocation2 [shape = 'u8[4096]{0}', space=vmem, size = 0x1000, scoped, tag = 'input window, operand 0, single buffered']
    #allocation3 [shape = 's32[1]{0}', space=sflag, size = 0x4, scoped, tag = 'scoped memory for tpu_custom_call.1']
    #allocation4 [shape = 's32[1]{0}', space=sflag, size = 0x4, scoped, tag = 'scoped memory for tpu_custom_call.1']
    #allocation5 [shape = 'u8[65536]{0}', space=vmem, size = 0x10000, scoped, tag = 'input window, operand 1, single buffered']
    #allocation6 [shape = 's32[1]{0}', space=sflag, size = 0x4, scoped, tag = 'scoped memory for tpu_custom_call.1']
    #allocation7 [shape = 'u8[65536]{0}', space=vmem, size = 0x10000, scoped, tag = 'input window, operand 2, single buffered']
    #allocation8 [shape = 'u8[65536]{0}', space=vmem, size = 0x10000, scoped, tag = 'input window, operand 3, single buffered']
    #allocation9 [shape = 's32[1]{0}', space=sflag, size = 0x4, scoped, tag = 'scoped memory for tpu_custom_call.1']
    #allocation10 [shape = 'u8[4096]{0}', space=vmem, size = 0x1000, scoped, tag = 'output window, operand 0, single buffered']
    %10 = vsyncpa [#allocation3], 0
    %11 = vsyncpa [#allocation6], 0
    %12 = vsyncpa [#allocation9], 0
    %13 = vsyncpa [#allocation4], 0
    // Predicated region
    $region2: #{tpu_custom_call.1} parent=1 // pred_check
      _
    $region3: #{tpu_custom_call.1} parent=1 // pred_check_branch
      %15 = sbr.rel (0) target = $region5
    $region4: #{tpu_custom_call.1} parent=1 // pred_region
      %s17 = ssub.s32 128, 128
      %18 = vsyncadd [#allocation3], %s17
      %s20 = sshll.u32 [#allocation2], 4
      %s21 = int_to_ptr.vmem [resolvable:$true] %s20
      %23 = dma.hbm_to_vmem [thread:$0]  %s0, 128, %s21, [#allocation3]
    $region5: #{tpu_custom_call.1} parent=1 // pred_fallthru
      _
    // Predicated region
    $region6: #{tpu_custom_call.1} parent=1 // pred_check
      _
    $region7: #{tpu_custom_call.1} parent=1 // pred_check_branch
      %25 = sbr.rel (0) target = $region9
    $region8: #{tpu_custom_call.1} parent=1 // pred_region
      %s27 = ssub.s32 2048, 2048
      %28 = vsyncadd [#allocation6], %s27
      %s29 = sshll.u32 [#allocation5], 4
      %s30 = int_to_ptr.vmem [resolvable:$true] %s29
      %35 = dma.hbm_to_vmem [thread:$0]  %s1, 2048, %s30, [#allocation6], 128, 128, 8
    $region9: #{tpu_custom_call.1} parent=1 // pred_fallthru
      _
    // Predicated region
    $region10: #{tpu_custom_call.1} parent=1 // pred_check
      _
    $region11: #{tpu_custom_call.1} parent=1 // pred_check_branch
      %37 = sbr.rel (0) target = $region13
    $region12: #{tpu_custom_call.1} parent=1 // pred_region
      %s39 = ssub.s32 2048, 2048
      %40 = vsyncadd [#allocation6], %s39
      %s41 = sshll.u32 [#allocation7], 4
      %s42 = int_to_ptr.vmem [resolvable:$true] %s41
      %47 = dma.hbm_to_vmem [thread:$0]  %s2, 2048, %s42, [#allocation6], 128, 128, 8
    $region13: #{tpu_custom_call.1} parent=1 // pred_fallthru
      _
    // Predicated region
    $region14: #{tpu_custom_call.1} parent=1 // pred_check
      _
    $region15: #{tpu_custom_call.1} parent=1 // pred_check_branch
      %49 = sbr.rel (0) target = $region17
    $region16: #{tpu_custom_call.1} parent=1 // pred_region
      %s51 = ssub.s32 2048, 2048
      %52 = vsyncadd [#allocation9], %s51
      %s53 = sshll.u32 [#allocation8], 4
      %s54 = int_to_ptr.vmem [resolvable:$true] %s53
      %59 = dma.hbm_to_vmem [thread:$0]  %s3, 2048, %s54, [#allocation9], 128, 128, 8
    $region17: #{tpu_custom_call.1} parent=1 // pred_fallthru
      _
    // Predicated region
    $region18: #{tpu_custom_call.1} parent=1 // pred_check
      _
    $region19: #{tpu_custom_call.1} parent=1 // pred_check_branch
      %61 = sbr.rel (0) target = $region21
    $region20: #{tpu_custom_call.1} parent=1 // pred_region
      _
    $region21: #{tpu_custom_call.1} parent=1 // pred_fallthru
      _
    // Predicated region
    $region22: #{tpu_custom_call.1} parent=1 // pred_check
      _
    $region23: #{tpu_custom_call.1} parent=1 // pred_check_branch
      %63 = sbr.rel (0) target = $region25
    $region24: #{tpu_custom_call.1} parent=1 // pred_region
      %64 = dma.done [#allocation3], 128
    $region25: #{tpu_custom_call.1} parent=1 // pred_fallthru
      _
    // Predicated region
    $region26: #{tpu_custom_call.1} parent=1 // pred_check
      _
    $region27: #{tpu_custom_call.1} parent=1 // pred_check_branch
      %66 = sbr.rel (0) target = $region29
    $region28: #{tpu_custom_call.1} parent=1 // pred_region
      %67 = dma.done [#allocation6], 2048
    $region29: #{tpu_custom_call.1} parent=1 // pred_fallthru
      _
    // Predicated region
    $region30: #{tpu_custom_call.1} parent=1 // pred_check
      _
    $region31: #{tpu_custom_call.1} parent=1 // pred_check_branch
      %69 = sbr.rel (0) target = $region33
    $region32: #{tpu_custom_call.1} parent=1 // pred_region
      %70 = dma.done [#allocation6], 2048
    $region33: #{tpu_custom_call.1} parent=1 // pred_fallthru
      _
    // Predicated region
    $region34: #{tpu_custom_call.1} parent=1 // pred_check
      _
    $region35: #{tpu_custom_call.1} parent=1 // pred_check_branch
      %72 = sbr.rel (0) target = $region37
    $region36: #{tpu_custom_call.1} parent=1 // pred_region
      %73 = dma.done [#allocation9], 2048
    $region37: #{tpu_custom_call.1} parent=1 // pred_fallthru
      _
    %p74 = scmp.eq.s32.totalorder 0, 0
    // Predicated region
    $region38: #{tpu_custom_call.1} parent=1 // pred_check
      %p75 = pneg %p74
    $region39: #{tpu_custom_call.1} parent=1 // pred_check_branch
      %77 = sbr.rel (%p75) target = $region41
    $region40: #{tpu_custom_call.1} parent=1 // pred_region
      %78 = vst [vmem:[#allocation10] sm:$0xff] 0.0
    $region41: #{tpu_custom_call.1} parent=1 // pred_fallthru
      _
    %v79 = vld [vmem:[#allocation5] sm:$0xff]
    %v80 = vld [vmem:[#allocation5 + $0x8] sm:$0xff]
    %v81 = vld [vmem:[#allocation5 + $0x10] sm:$0xff]
    %v82 = vld [vmem:[#allocation5 + $0x18] sm:$0xff]
    %v83 = vld [vmem:[#allocation5 + $0x20] sm:$0xff]
    %v84 = vld [vmem:[#allocation5 + $0x28] sm:$0xff]
    %v85 = vld [vmem:[#allocation5 + $0x30] sm:$0xff]
    %v86 = vld [vmem:[#allocation5 + $0x38] sm:$0xff]
    %v87 = vld [vmem:[#allocation5 + $0x40] sm:$0xff]
    %v88 = vld [vmem:[#allocation5 + $0x48] sm:$0xff]
    %v89 = vld [vmem:[#allocation5 + $0x50] sm:$0xff]
    %v90 = vld [vmem:[#allocation5 + $0x58] sm:$0xff]
    %v91 = vld [vmem:[#allocation5 + $0x60] sm:$0xff]
    %v92 = vld [vmem:[#allocation5 + $0x68] sm:$0xff]
    %v93 = vld [vmem:[#allocation5 + $0x70] sm:$0xff]
    %v94 = vld [vmem:[#allocation5 + $0x78] sm:$0xff]
    %v95 = vld [vmem:[#allocation7] sm:$0xff]
    %v96 = vld [vmem:[#allocation7 + $0x8] sm:$0xff]
    %v97 = vld [vmem:[#allocation7 + $0x10] sm:$0xff]
    %v98 = vld [vmem:[#allocation7 + $0x18] sm:$0xff]
    %v99 = vld [vmem:[#allocation7 + $0x20] sm:$0xff]
    %v100 = vld [vmem:[#allocation7 + $0x28] sm:$0xff]
    %v101 = vld [vmem:[#allocation7 + $0x30] sm:$0xff]
    %v102 = vld [vmem:[#allocation7 + $0x38] sm:$0xff]
    %v103 = vld [vmem:[#allocation7 + $0x40] sm:$0xff]
    %v104 = vld [vmem:[#allocation7 + $0x48] sm:$0xff]
    %v105 = vld [vmem:[#allocation7 + $0x50] sm:$0xff]
    %v106 = vld [vmem:[#allocation7 + $0x58] sm:$0xff]
    %v107 = vld [vmem:[#allocation7 + $0x60] sm:$0xff]
    %v108 = vld [vmem:[#allocation7 + $0x68] sm:$0xff]
    %v109 = vld [vmem:[#allocation7 + $0x70] sm:$0xff]
    %v110 = vld [vmem:[#allocation7 + $0x78] sm:$0xff]
    %vm111 = vcmp.gt.f32.partialorder %v95, 20.0
    %vm112 = vcmp.gt.f32.partialorder %v96, 20.0
    %vm113 = vcmp.gt.f32.partialorder %v97, 20.0
    %vm114 = vcmp.gt.f32.partialorder %v98, 20.0
    %vm115 = vcmp.gt.f32.partialorder %v99, 20.0
    %vm116 = vcmp.gt.f32.partialorder %v100, 20.0
    %vm117 = vcmp.gt.f32.partialorder %v101, 20.0
    %vm118 = vcmp.gt.f32.partialorder %v102, 20.0
    %vm119 = vcmp.gt.f32.partialorder %v103, 20.0
    %vm120 = vcmp.gt.f32.partialorder %v104, 20.0
    %vm121 = vcmp.gt.f32.partialorder %v105, 20.0
    %vm122 = vcmp.gt.f32.partialorder %v106, 20.0
    %vm123 = vcmp.gt.f32.partialorder %v107, 20.0
    %vm124 = vcmp.gt.f32.partialorder %v108, 20.0
    %vm125 = vcmp.gt.f32.partialorder %v109, 20.0
    %vm126 = vcmp.gt.f32.partialorder %v110, 20.0
    %v127 = vmin.f32 %v95, 20.0
    %v128 = vmin.f32 %v96, 20.0
    %v129 = vmin.f32 %v97, 20.0
    %v130 = vmin.f32 %v98, 20.0
    %v131 = vmin.f32 %v99, 20.0
    %v132 = vmin.f32 %v100, 20.0
    %v133 = vmin.f32 %v101, 20.0
    %v134 = vmin.f32 %v102, 20.0
    %v135 = vmin.f32 %v103, 20.0
    %v136 = vmin.f32 %v104, 20.0
    %v137 = vmin.f32 %v105, 20.0
    %v138 = vmin.f32 %v106, 20.0
    %v139 = vmin.f32 %v107, 20.0
    %v140 = vmin.f32 %v108, 20.0
    %v141 = vmin.f32 %v109, 20.0
    %v142 = vmin.f32 %v110, 20.0
    %v143 = vmul.f32 %v127, 1.442695
    %v144 = vpow.pop %v143
    %v145 = vmul.f32 %v128, 1.442695
    %v146 = vpow.pop %v145
    %v147 = vmul.f32 %v129, 1.442695
    %v148 = vpow.pop %v147
    %v149 = vmul.f32 %v130, 1.442695
    %v150 = vpow.pop %v149
    %v151 = vmul.f32 %v131, 1.442695
    %v152 = vpow.pop %v151
    %v153 = vmul.f32 %v132, 1.442695
    %v154 = vpow.pop %v153
    %v155 = vmul.f32 %v133, 1.442695
    %v156 = vpow.pop %v155
    %v157 = vmul.f32 %v134, 1.442695
    %v158 = vpow.pop %v157
    %v159 = vmul.f32 %v135, 1.442695
    %v160 = vpow.pop %v159
    %v161 = vmul.f32 %v136, 1.442695
    %v162 = vpow.pop %v161
    %v163 = vmul.f32 %v137, 1.442695
    %v164 = vpow.pop %v163
    %v165 = vmul.f32 %v138, 1.442695
    %v166 = vpow.pop %v165
    %v167 = vmul.f32 %v139, 1.442695
    %v168 = vpow.pop %v167
    %v169 = vmul.f32 %v140, 1.442695
    %v170 = vpow.pop %v169
    %v171 = vmul.f32 %v141, 1.442695
    %v172 = vpow.pop %v171
    %v173 = vmul.f32 %v142, 1.442695
    %v174 = vpow.pop %v173
    %v175 = vadd.f32 %v144, 1.0
    %v176 = vlog2.pop %v175
    %v177 = vmul.f32 %v176, 0.6931472
    %v178 = vmul.f32 -0.5, %v144
    %v179 = vadd.f32 %v178, 1.0
    %v180 = vmul.f32 %v179, %v144
    %v181 = vand.u32 2147483647, %v144
    %vm182 = vcmp.lt.f32.partialorder %v181, 0.0004427343
    %v183 = vsel %vm182, %v180, %v177
    %v184 = vadd.f32 %v146, 1.0
    %v185 = vlog2.pop %v184
    %v186 = vmul.f32 %v185, 0.6931472
    %v187 = vmul.f32 -0.5, %v146
    %v188 = vadd.f32 %v187, 1.0
    %v189 = vmul.f32 %v188, %v146
    %v190 = vand.u32 2147483647, %v146
    %vm191 = vcmp.lt.f32.partialorder %v190, 0.0004427343
    %v192 = vsel %vm191, %v189, %v186
    %v193 = vadd.f32 %v148, 1.0
    %v194 = vlog2.pop %v193
    %v195 = vmul.f32 %v194, 0.6931472
    %v196 = vmul.f32 -0.5, %v148
    %v197 = vadd.f32 %v196, 1.0
    %v198 = vmul.f32 %v197, %v148
    %v199 = vand.u32 2147483647, %v148
    %vm200 = vcmp.lt.f32.partialorder %v199, 0.0004427343
    %v201 = vsel %vm200, %v198, %v195
    %v202 = vadd.f32 %v150, 1.0
    %v203 = vlog2.pop %v202
    %v204 = vmul.f32 %v203, 0.6931472
    %v205 = vmul.f32 -0.5, %v150
    %v206 = vadd.f32 %v205, 1.0
    %v207 = vmul.f32 %v206, %v150
    %v208 = vand.u32 2147483647, %v150
    %vm209 = vcmp.lt.f32.partialorder %v208, 0.0004427343
    %v210 = vsel %vm209, %v207, %v204
    %v211 = vadd.f32 %v152, 1.0
    %v212 = vlog2.pop %v211
    %v213 = vmul.f32 %v212, 0.6931472
    %v214 = vmul.f32 -0.5, %v152
    %v215 = vadd.f32 %v214, 1.0
    %v216 = vmul.f32 %v215, %v152
    %v217 = vand.u32 2147483647, %v152
    %vm218 = vcmp.lt.f32.partialorder %v217, 0.0004427343
    %v219 = vsel %vm218, %v216, %v213
    %v220 = vadd.f32 %v154, 1.0
    %v221 = vlog2.pop %v220
    %v222 = vmul.f32 %v221, 0.6931472
    %v223 = vmul.f32 -0.5, %v154
    %v224 = vadd.f32 %v223, 1.0
    %v225 = vmul.f32 %v224, %v154
    %v226 = vand.u32 2147483647, %v154
    %vm227 = vcmp.lt.f32.partialorder %v226, 0.0004427343
    %v228 = vsel %vm227, %v225, %v222
    %v229 = vadd.f32 %v156, 1.0
    %v230 = vlog2.pop %v229
    %v231 = vmul.f32 %v230, 0.6931472
    %v232 = vmul.f32 -0.5, %v156
    %v233 = vadd.f32 %v232, 1.0
    %v234 = vmul.f32 %v233, %v156
    %v235 = vand.u32 2147483647, %v156
    %vm236 = vcmp.lt.f32.partialorder %v235, 0.0004427343
    %v237 = vsel %vm236, %v234, %v231
    %v238 = vadd.f32 %v158, 1.0
    %v239 = vlog2.pop %v238
    %v240 = vmul.f32 %v239, 0.6931472
    %v241 = vmul.f32 -0.5, %v158
    %v242 = vadd.f32 %v241, 1.0
    %v243 = vmul.f32 %v242, %v158
    %v244 = vand.u32 2147483647, %v158
    %vm245 = vcmp.lt.f32.partialorder %v244, 0.0004427343
    %v246 = vsel %vm245, %v243, %v240
    %v247 = vadd.f32 %v160, 1.0
    %v248 = vlog2.pop %v247
    %v249 = vmul.f32 %v248, 0.6931472
    %v250 = vmul.f32 -0.5, %v160
    %v251 = vadd.f32 %v250, 1.0
    %v252 = vmul.f32 %v251, %v160
    %v253 = vand.u32 2147483647, %v160
    %vm254 = vcmp.lt.f32.partialorder %v253, 0.0004427343
    %v255 = vsel %vm254, %v252, %v249
    %v256 = vadd.f32 %v162, 1.0
    %v257 = vlog2.pop %v256
    %v258 = vmul.f32 %v257, 0.6931472
    %v259 = vmul.f32 -0.5, %v162
    %v260 = vadd.f32 %v259, 1.0
    %v261 = vmul.f32 %v260, %v162
    %v262 = vand.u32 2147483647, %v162
    %vm263 = vcmp.lt.f32.partialorder %v262, 0.0004427343
    %v264 = vsel %vm263, %v261, %v258
    %v265 = vadd.f32 %v164, 1.0
    %v266 = vlog2.pop %v265
    %v267 = vmul.f32 %v266, 0.6931472
    %v268 = vmul.f32 -0.5, %v164
    %v269 = vadd.f32 %v268, 1.0
    %v270 = vmul.f32 %v269, %v164
    %v271 = vand.u32 2147483647, %v164
    %vm272 = vcmp.lt.f32.partialorder %v271, 0.0004427343
    %v273 = vsel %vm272, %v270, %v267
    %v274 = vadd.f32 %v166, 1.0
    %v275 = vlog2.pop %v274
    %v276 = vmul.f32 %v275, 0.6931472
    %v277 = vmul.f32 -0.5, %v166
    %v278 = vadd.f32 %v277, 1.0
    %v279 = vmul.f32 %v278, %v166
    %v280 = vand.u32 2147483647, %v166
    %vm281 = vcmp.lt.f32.partialorder %v280, 0.0004427343
    %v282 = vsel %vm281, %v279, %v276
    %v283 = vadd.f32 %v168, 1.0
    %v284 = vlog2.pop %v283
    %v285 = vmul.f32 %v284, 0.6931472
    %v286 = vmul.f32 -0.5, %v168
    %v287 = vadd.f32 %v286, 1.0
    %v288 = vmul.f32 %v287, %v168
    %v289 = vand.u32 2147483647, %v168
    %vm290 = vcmp.lt.f32.partialorder %v289, 0.0004427343
    %v291 = vsel %vm290, %v288, %v285
    %v292 = vadd.f32 %v170, 1.0
    %v293 = vlog2.pop %v292
    %v294 = vmul.f32 %v293, 0.6931472
    %v295 = vmul.f32 -0.5, %v170
    %v296 = vadd.f32 %v295, 1.0
    %v297 = vmul.f32 %v296, %v170
    %v298 = vand.u32 2147483647, %v170
    %vm299 = vcmp.lt.f32.partialorder %v298, 0.0004427343
    %v300 = vsel %vm299, %v297, %v294
    %v301 = vadd.f32 %v172, 1.0
    %v302 = vlog2.pop %v301
    %v303 = vmul.f32 %v302, 0.6931472
    %v304 = vmul.f32 -0.5, %v172
    %v305 = vadd.f32 %v304, 1.0
    %v306 = vmul.f32 %v305, %v172
    %v307 = vand.u32 2147483647, %v172
    %vm308 = vcmp.lt.f32.partialorder %v307, 0.0004427343
    %v309 = vsel %vm308, %v306, %v303
    %v310 = vadd.f32 %v174, 1.0
    %v311 = vlog2.pop %v310
    %v312 = vmul.f32 %v311, 0.6931472
    %v313 = vmul.f32 -0.5, %v174
    %v314 = vadd.f32 %v313, 1.0
    %v315 = vmul.f32 %v314, %v174
    %v316 = vand.u32 2147483647, %v174
    %vm317 = vcmp.lt.f32.partialorder %v316, 0.0004427343
    %v318 = vsel %vm317, %v315, %v312
    %v319 = vsel %vm111, %v95, %v183
    %v320 = vsel %vm112, %v96, %v192
    %v321 = vsel %vm113, %v97, %v201
    %v322 = vsel %vm114, %v98, %v210
    %v323 = vsel %vm115, %v99, %v219
    %v324 = vsel %vm116, %v100, %v228
    %v325 = vsel %vm117, %v101, %v237
    %v326 = vsel %vm118, %v102, %v246
    %v327 = vsel %vm119, %v103, %v255
    %v328 = vsel %vm120, %v104, %v264
    %v329 = vsel %vm121, %v105, %v273
    %v330 = vsel %vm122, %v106, %v282
    %v331 = vsel %vm123, %v107, %v291
    %v332 = vsel %vm124, %v108, %v300
    %v333 = vsel %vm125, %v109, %v309
    %v334 = vsel %vm126, %v110, %v318
    %v335 = vld [vmem:[#allocation8] sm:$0xff]
    %v336 = vld [vmem:[#allocation8 + $0x8] sm:$0xff]
    %v337 = vld [vmem:[#allocation8 + $0x10] sm:$0xff]
    %v338 = vld [vmem:[#allocation8 + $0x18] sm:$0xff]
    %v339 = vld [vmem:[#allocation8 + $0x20] sm:$0xff]
    %v340 = vld [vmem:[#allocation8 + $0x28] sm:$0xff]
    %v341 = vld [vmem:[#allocation8 + $0x30] sm:$0xff]
    %v342 = vld [vmem:[#allocation8 + $0x38] sm:$0xff]
    %v343 = vld [vmem:[#allocation8 + $0x40] sm:$0xff]
    %v344 = vld [vmem:[#allocation8 + $0x48] sm:$0xff]
    %v345 = vld [vmem:[#allocation8 + $0x50] sm:$0xff]
    %v346 = vld [vmem:[#allocation8 + $0x58] sm:$0xff]
    %v347 = vld [vmem:[#allocation8 + $0x60] sm:$0xff]
    %v348 = vld [vmem:[#allocation8 + $0x68] sm:$0xff]
    %v349 = vld [vmem:[#allocation8 + $0x70] sm:$0xff]
    %v350 = vld [vmem:[#allocation8 + $0x78] sm:$0xff]
    %v351 = vmul.f32 %v319, %v335
    %v352 = vmul.f32 %v320, %v336
    %v353 = vmul.f32 %v321, %v337
    %v354 = vmul.f32 %v322, %v338
    %v355 = vmul.f32 %v323, %v339
    %v356 = vmul.f32 %v324, %v340
    %v357 = vmul.f32 %v325, %v341
    %v358 = vmul.f32 %v326, %v342
    %v359 = vmul.f32 %v327, %v343
    %v360 = vmul.f32 %v328, %v344
    %v361 = vmul.f32 %v329, %v345
    %v362 = vmul.f32 %v330, %v346
    %v363 = vmul.f32 %v331, %v347
    %v364 = vmul.f32 %v332, %v348
    %v365 = vmul.f32 %v333, %v349
    %v366 = vmul.f32 %v334, %v350
    %v367 = vadd.f32 %v79, %v351
    %v368 = vadd.f32 %v80, %v352
    %v369 = vadd.f32 %v81, %v353
    %v370 = vadd.f32 %v82, %v354
    %v371 = vadd.f32 %v83, %v355
    %v372 = vadd.f32 %v84, %v356
    %v373 = vadd.f32 %v85, %v357
    %v374 = vadd.f32 %v86, %v358
    %v375 = vadd.f32 %v87, %v359
    %v376 = vadd.f32 %v88, %v360
    %v377 = vadd.f32 %v89, %v361
    %v378 = vadd.f32 %v90, %v362
    %v379 = vadd.f32 %v91, %v363
    %v380 = vadd.f32 %v92, %v364
    %v381 = vadd.f32 %v93, %v365
    %v382 = vadd.f32 %v94, %v366
    %v383 = vld [vmem:[#allocation10] sm:$0xff]
    %v384 = vld [vmem:[#allocation2] sm:$0xff]
    %385 = vmatprep.subr.mxu0 0.0
    %386 = vmatpush1.xpose.msra.mxu0 %v367
    %387 = vmatprep.subr.mxu0 0.0
    %388 = vmatpush1.xpose.msra.mxu0 %v368
    %389 = vmatprep.subr.mxu0 0.0
    %390 = vmatpush1.xpose.msra.mxu0 %v369
    %391 = vmatprep.subr.mxu0 0.0
    %392 = vmatpush1.xpose.msra.mxu0 %v370
    %393 = vmatprep.subr.mxu0 0.0
    %394 = vmatpush1.xpose.msra.mxu0 %v371
    %395 = vmatprep.subr.mxu0 0.0
    %396 = vmatpush1.xpose.msra.mxu0 %v372
    %397 = vmatprep.subr.mxu0 0.0
    %398 = vmatpush1.xpose.msra.mxu0 %v373
    %399 = vmatprep.subr.mxu0 0.0
    %400 = vmatpush1.xpose.msra.mxu0 %v374
    %401 = vmatprep.subr.mxu0 0.0
    %402 = vmatpush1.xpose.msra.mxu0 %v375
    %403 = vmatprep.subr.mxu0 0.0
    %404 = vmatpush1.xpose.msra.mxu0 %v376
    %405 = vmatprep.subr.mxu0 0.0
    %406 = vmatpush1.xpose.msra.mxu0 %v377
    %407 = vmatprep.subr.mxu0 0.0
    %408 = vmatpush1.xpose.msra.mxu0 %v378
    %409 = vmatprep.subr.mxu0 0.0
    %410 = vmatpush1.xpose.msra.mxu0 %v379
    %411 = vmatprep.subr.mxu0 0.0
    %412 = vmatpush1.xpose.msra.mxu0 %v380
    %413 = vmatprep.subr.mxu0 0.0
    %414 = vmatpush1.xpose.msra.mxu0 %v381
    %415 = vmatprep.subr.mxu0 0.0
    %416 = vmatpush1.xpose.msra.mxu0 %v382
    %417 = vmatprep.subr.mxu0 0.0
    %418 = vmatpush1.xpose.msra.mxu0 0.0
    %419 = vmatprep.subr.mxu0 0.0
    %420 = vmatpush1.xpose.msra.mxu0 0.0
    %421 = vmatprep.subr.mxu0 0.0
    %422 = vmatpush1.xpose.msra.mxu0 0.0
    %423 = vmatprep.subr.mxu0 0.0
    %424 = vmatpush1.xpose.msra.mxu0 0.0
    %425 = vmatprep.subr.mxu0 0.0
    %426 = vmatpush1.xpose.msra.mxu0 0.0
    %427 = vmatprep.subr.mxu0 0.0
    %428 = vmatpush1.xpose.msra.mxu0 0.0
    %429 = vmatprep.subr.mxu0 0.0
    %430 = vmatpush1.xpose.msra.mxu0 0.0
    %431 = vmatprep.subr.mxu0 0.0
    %432 = vmatpush1.xpose.msra.mxu0 0.0
    %433 = vmatprep.subr.mxu0 0.0
    %434 = vmatpush1.xpose.msra.mxu0 0.0
    %435 = vmatprep.subr.mxu0 0.0
    %436 = vmatpush1.xpose.msra.mxu0 0.0
    %437 = vmatprep.subr.mxu0 0.0
    %438 = vmatpush1.xpose.msra.mxu0 0.0
    %439 = vmatprep.subr.mxu0 0.0
    %440 = vmatpush1.xpose.msra.mxu0 0.0
    %441 = vmatprep.subr.mxu0 0.0
    %442 = vmatpush1.xpose.msra.mxu0 0.0
    %443 = vmatprep.subr.mxu0 0.0
    %444 = vmatpush1.xpose.msra.mxu0 0.0
    %445 = vmatprep.subr.mxu0 0.0
    %446 = vmatpush1.xpose.msra.mxu0 0.0
    %447 = vmatprep.subr.mxu0 0.0
    %448 = vmatpush1.xpose.msra.mxu0 0.0
    %449 = vmatprep.mubr.f32.mxu0 0.0
    %450 = vmatmul.mubr.f32.gmra.mrb[0].mxu0 %v384
    %v451 = vpop.f32.mrb[0].mxu0
    %v452 = vadd.f32 0.0, %v451
    %v453 = vpop.f32.mrb[0].mxu0
    %454 = vdwg.mxu0
    %v455 = vadd.f32 %v383, %v452
    %456 = vst [vmem:[#allocation10] sm:$0xff] %v455
    // Predicated region
    $region42: #{tpu_custom_call.1} parent=1 // pred_check
      %p457 = pneg %p74
    $region43: #{tpu_custom_call.1} parent=1 // pred_check_branch
      %459 = sbr.rel (%p457) target = $region45
    $region44: #{tpu_custom_call.1} parent=1 // pred_region
      %v460 = vld [vmem:[#allocation10] sm:$0xff]
      %v461 = vld [vmem:[%s4] sm:$0x1]
      %v463 = vlaneseq
      %v464 = vshrl.u32 %v463, 7
      %v465 = vsub.s32 0, %v464
      %v466 = vrot.slane %v461, %v465
      %v468 = vadd.f32 %v460, %v466
      %469 = vst [vmem:[#allocation10] sm:$0xff] %v468
    $region45: #{tpu_custom_call.1} parent=1 // pred_fallthru
      _
    // Predicated region
    $region46: #{tpu_custom_call.1} parent=1 // pred_check
      _
    $region47: #{tpu_custom_call.1} parent=1 // pred_check_branch
      %471 = sbr.rel (0) target = $region49
    $region48: #{tpu_custom_call.1} parent=1 // pred_region
      %s473 = ssub.s32 128, 128
      %474 = vsyncadd [#allocation4], %s473
      %s476 = sshll.u32 [#allocation10], 4
      %s477 = int_to_ptr.vmem [resolvable:$true] %s476
      %479 = dma.vmem_to_hbm [thread:$0]  %s477, 128, %s5, [#allocation4]
    $region49: #{tpu_custom_call.1} parent=1 // pred_fallthru
      _
    // Predicated region
    $region50: #{tpu_custom_call.1} parent=1 // pred_check
      _
    $region51: #{tpu_custom_call.1} parent=1 // pred_check_branch
      %481 = sbr.rel (0) target = $region53
    $region52: #{tpu_custom_call.1} parent=1 // pred_region
      %482 = dma.done [#allocation4], 128
    $region53: #{tpu_custom_call.1} parent=1 // pred_fallthru
      _
    %483 = vsyncpa [#allocation3], 1
    %484 = vsyncpa [#allocation6], 1
    %485 = vsyncpa [#allocation9], 1
    %486 = vsyncpa [#allocation4], 1

</llo_original>
